<compile_context>
chip_gen: v5e
topology: v5e:2x2
jax: 0.10.0
libtpu: 0.0.40
codegen_flags: <defaults>
</compile_context>

<pallas_src>
import functools

import jax
import jax.numpy as jnp
from jax import lax
from jax.experimental import pallas as pl
from jax.experimental.pallas import tpu as pltpu


# ----------------------------------------------------------------------------
# helpers
# ----------------------------------------------------------------------------
def _round_up(x, m):
    return ((x + m - 1) // m) * m


def _pick_chunk(d, target=512):
    for c in (target, 256, 128):
        if c <= d and d % c == 0:
            return c
    return d


def _im2col_1d(x, kernel_size=4, stride=2, padding=1):
    """x: (B, C, L) -> patches (B*L_out, C*kernel_size), L_out.

    Pure layout plumbing (strided slices / transpose / reshape) done in XLA;
    the dense compute happens in the Pallas kernels below.
    """
    b, c, l = x.shape
    l_out = (l + 2 * padding - kernel_size) // stride + 1
    xp = jnp.pad(x, ((0, 0), (0, 0), (padding, padding)))
    cols = [
        xp[:, :, k : k + stride * (l_out - 1) + 1 : stride]  # (B, C, L_out)
        for k in range(kernel_size)
    ]
    patches = jnp.stack(cols, axis=-1)                 # (B, C, L_out, K)
    patches = jnp.transpose(patches, (0, 2, 1, 3))     # (B, L_out, C, K)
    patches = patches.reshape(b * l_out, c * kernel_size)
    return patches, l_out


# ----------------------------------------------------------------------------
# Kernel 1: fused (patches @ W^T + b) -> LeakyReLU, tiled over rows
# ----------------------------------------------------------------------------
def _matmul_bias_lrelu_kernel(x_ref, w_ref, b_ref, o_ref, *, negative_slope):
    # x_ref: (TM, K), w_ref: (O, K) [PyTorch layout, contraction on dim 1 of both],
    # b_ref: (1, O), o_ref: (TM, O)
    acc = lax.dot_general(
        x_ref[...], w_ref[...],
        dimension_numbers=(((1,), (1,)), ((), ())),
        preferred_element_type=jnp.float32,
    )
    y = acc + b_ref[...].astype(jnp.float32)
    y = jnp.where(y >= 0, y, negative_slope * y)
    o_ref[...] = y.astype(o_ref.dtype)


def _linear_leaky_relu(x2d, w2d, bias, *, negative_slope=0.2, tm=512):
    """y = LeakyReLU(x2d @ w2d^T + bias).  x2d: (M, K), w2d: (O, K), bias: (O,)."""
    m, k = x2d.shape
    o = w2d.shape[0]

    # Row tile: big enough for pipelining, multiple of 8 (sublane), conservative
    # enough for v5e's 16 MiB scoped VMEM.
    tm_eff = min(tm, _round_up(m, 8))
    mp = _round_up(m, tm_eff)
    if mp != m:
        x2d = jnp.pad(x2d, ((0, mp - m), (0, 0)))

    grid = (mp // tm_eff,)
    kernel = functools.partial(
        _matmul_bias_lrelu_kernel, negative_slope=negative_slope)

    cost = pl.CostEstimate(
        flops=2 * mp * k * o + 2 * mp * o,
        transcendentals=0,
        bytes_accessed=4 * (mp * k + k * o + o + mp * o),
    )

    out = pl.pallas_call(
        kernel,
        out_shape=jax.ShapeDtypeStruct((mp, o), x2d.dtype),
        grid_spec=pltpu.PrefetchScalarGridSpec(
            num_scalar_prefetch=0,
            grid=grid,
            in_specs=[
                pl.BlockSpec((tm_eff, k), lambda i: (i, 0)),   # streamed row tiles
                pl.BlockSpec((o, k), lambda i: (0, 0)),        # weight: VMEM-resident
                pl.BlockSpec((1, o), lambda i: (0, 0)),        # bias:   VMEM-resident
            ],
            out_specs=pl.BlockSpec((tm_eff, o), lambda i: (i, 0)),
        ),
        compiler_params=pltpu.CompilerParams(
            dimension_semantics=("parallel",)),
        cost_estimate=cost,
    )(x2d, w2d, bias.reshape(1, o))

    return out[:m]


# ----------------------------------------------------------------------------
# Kernel 2: Linear(in=D, out=1) via VPU multiply + lane reduce (no MXU),
# accumulated over D-chunks on the grid.
# ----------------------------------------------------------------------------
def _fc_vpu_kernel(f_ref, w_ref, b_ref, o_ref, acc_ref):
    # f_ref: (B, TD), w_ref: (1, TD), b_ref: (1, 1), o_ref: (B, 1), acc_ref: (B, 1) f32
    d = pl.program_id(0)

    @pl.when(d == 0)
    def _init():
        acc_ref[...] = jnp.zeros_like(acc_ref)

    prod = f_ref[...].astype(jnp.float32) * w_ref[...].astype(jnp.float32)
    acc_ref[...] += jnp.sum(prod, axis=-1, keepdims=True)

    @pl.when(d == pl.num_programs(0) - 1)
    def _finalize():
        o_ref[...] = (acc_ref[...] + b_ref[...].astype(jnp.float32)).astype(o_ref.dtype)


def _fc_head(feats, w_fc, b_fc, *, td_target=512):
    """out = feats @ w_fc^T + b_fc.  feats: (B, D), w_fc: (1, D), b_fc: (1,)."""
    b, d = feats.shape
    td = _pick_chunk(d, td_target)   # D is a multiple of 128 (hidden_dim = 128)
    grid = (d // td,)

    cost = pl.CostEstimate(
        flops=2 * b * d,
        transcendentals=0,
        bytes_accessed=4 * (b * d + d + 1 + b),
    )

    out = pl.pallas_call(
        _fc_vpu_kernel,
        out_shape=jax.ShapeDtypeStruct((b, 1), feats.dtype),
        grid_spec=pltpu.PrefetchScalarGridSpec(
            num_scalar_prefetch=0,
            grid=grid,
            in_specs=[
                pl.BlockSpec((b, td), lambda i: (0, i)),   # streamed feature chunks
                pl.BlockSpec((1, td), lambda i: (0, i)),   # weight row chunks
                pl.BlockSpec((1, 1), lambda i: (0, 0)),    # bias scalar
            ],
            out_specs=pl.BlockSpec((b, 1), lambda i: (0, 0)),
            scratch_shapes=[pltpu.VMEM((b, 1), jnp.float32)],
        ),
        compiler_params=pltpu.CompilerParams(
            dimension_semantics=("arbitrary",)),   # reduction axis
        cost_estimate=cost,
    )(feats, w_fc.reshape(1, d), b_fc.reshape(1, 1))

    return out


# ----------------------------------------------------------------------------
# Full TimeSeriesCritic forward
# ----------------------------------------------------------------------------
def time_series_critic(x, w1, b1, w2, b2, w_fc, b_fc, *, negative_slope=0.2):
    """x: (B, C, L); weights in PyTorch layouts:
       w1 (64, C, 4), b1 (64,), w2 (128, 64, 4), b2 (128,), w_fc (1, 128*L//4), b_fc (1,)."""
    bsz, c, l = x.shape
    hid1 = w1.shape[0]
    hid2 = w2.shape[0]

    # conv1 + LeakyReLU
    p1, l1 = _im2col_1d(x, 4, 2, 1)                               # (B*L1, C*4)
    y1 = _linear_leaky_relu(p1, w1.reshape(hid1, -1), b1,
                            negative_slope=negative_slope)        # (B*L1, 64)
    h1 = y1.reshape(bsz, l1, hid1).transpose(0, 2, 1)             # (B, 64, L1)

    # conv2 + LeakyReLU
    p2, l2 = _im2col_1d(h1, 4, 2, 1)                              # (B*L2, 64*4)
    y2 = _linear_leaky_relu(p2, w2.reshape(hid2, -1), b2,
                            negative_slope=negative_slope)        # (B*L2, 128)

    # flatten in PyTorch order: (B, channels, time) -> (B, channels*time)
    feats = y2.reshape(bsz, l2, hid2).transpose(0, 2, 1).reshape(bsz, hid2 * l2)

    # final critic score
    return _fc_head(feats, w_fc, b_fc)                            # (B, 1)


# ----------------------------------------------------------------------------
# Pure-JAX reference (independent path: lax.conv_general_dilated)
# ----------------------------------------------------------------------------
def _reference_forward(x, w1, b1, w2, b2, w_fc, b_fc, negative_slope=0.2):
    def conv(v, w, b):
        y = lax.conv_general_dilated(
            v, w, window_strides=(2,), padding=[(1, 1)],
            dimension_numbers=("NCH", "OIH", "NCH"))
        return y + b[None, :, None]

    def lrelu(v):
        return jnp.where(v >= 0, v, negative_slope * v)

    h = lrelu(conv(x, w1, b1))
    h = lrelu(conv(h, w2, b2))
    feats = h.reshape(h.shape[0], -1)
    return feats @ w_fc.T + b_fc[None, :]


if __name__ == "__main__":
    # Small deterministic problem consistent with the module:
    # batch=2, channels=1, series_length=64, hidden_dim=128 (fixed by the module).
    batch, channels, series_length = 2, 1, 64
    hidden_dim = 128

    key = jax.random.PRNGKey(0)
    kx, kw1, kb1, kw2, kb2, kwf, kbf = jax.random.split(key, 7)

    x = jax.random.normal(kx, (batch, channels, series_length), dtype=jnp.float32)

    def uinit(k, shape, fan_in):
        bound = 1.0 / (fan_in ** 0.5)
        return jax.random.uniform(k, shape, minval=-bound, maxval=bound,
                                  dtype=jnp.float32)

    # PyTorch-style uniform(-1/sqrt(fan_in), 1/sqrt(fan_in)) init
    w1 = uinit(kw1, (64, channels, 4), channels * 4)
    b1 = uinit(kb1, (64,), channels * 4)
    w2 = uinit(kw2, (hidden_dim, 64, 4), 64 * 4)
    b2 = uinit(kb2, (hidden_dim,), 64 * 4)
    fc_in = hidden_dim * (series_length // 4)
    w_fc = uinit(kwf, (1, fc_in), fc_in)
    b_fc = uinit(kbf, (1,), fc_in)

    y = time_series_critic(x, w1, b1, w2, b2, w_fc, b_fc)
    y = jax.block_until_ready(y)

    y_ref = _reference_forward(x, w1, b1, w2, b2, w_fc, b_fc)
    assert y.shape == (batch, 1), y.shape
    assert jnp.allclose(y, y_ref, atol=1e-4, rtol=1e-4), (y, y_ref)

    print("KERNEL_OK")
</pallas_src>

<mosaic_0001>
module attributes {stable_mosaic.version = 11 : i64} {
  func.func @_matmul_bias_lrelu_kernel(%arg0: i32, %arg1: memref<64x4xf32, #tpu.memory_space<vmem>>, %arg2: memref<64x4xf32, #tpu.memory_space<vmem>>, %arg3: memref<1x64xf32, #tpu.memory_space<vmem>>, %arg4: memref<64x64xf32, #tpu.memory_space<vmem>>) attributes {dimension_semantics = [#tpu.dimension_semantics<parallel>], iteration_bounds = array<i64: 1>, scalar_prefetch = 0 : i64, scratch_operands = 0 : i64, tpu.core_type = #tpu.core_type<tc>, window_params = [{transform_indices = @transform_0, window_bounds = array<i64: 64, 4>}, {pipeline_mode = #tpu.pipeline_mode<synchronous>, transform_indices = @transform_1, window_bounds = array<i64: 64, 4>}, {pipeline_mode = #tpu.pipeline_mode<synchronous>, transform_indices = @transform_2, window_bounds = array<i64: 1, 64>}, {transform_indices = @transform_3, window_bounds = array<i64: 64, 64>}]} {
    %c0 = arith.constant 0 : index
    %c0_0 = arith.constant 0 : index
    %0 = vector.load %arg1[%c0, %c0_0] : memref<64x4xf32, #tpu.memory_space<vmem>>, vector<64x4xf32>
    %c0_1 = arith.constant 0 : index
    %c0_2 = arith.constant 0 : index
    %1 = vector.load %arg2[%c0_1, %c0_2] : memref<64x4xf32, #tpu.memory_space<vmem>>, vector<64x4xf32>
    %cst = arith.constant dense<0.000000e+00> : vector<64x64xf32>
    %2 = tpu.matmul %0, %1, %cst {dimension_numbers = #tpu.dot_dimension_numbers<[1], [1], [0], [0], [0, 0, 1, 0], [], []>} : vector<64x4xf32>, vector<64x4xf32>, vector<64x64xf32> -> vector<64x64xf32>
    %c0_3 = arith.constant 0 : index
    %c0_4 = arith.constant 0 : index
    %3 = vector.load %arg3[%c0_3, %c0_4] : memref<1x64xf32, #tpu.memory_space<vmem>>, vector<1x64xf32>
    %4 = vector.broadcast %3 : vector<1x64xf32> to vector<64x64xf32>
    %5 = arith.addf %2, %4 : vector<64x64xf32>
    %cst_5 = arith.constant 0.000000e+00 : f32
    %6 = vector.broadcast %cst_5 : f32 to vector<64x64xf32>
    %7 = arith.cmpf oge, %5, %6 : vector<64x64xf32>
    %cst_6 = arith.constant 2.000000e-01 : f32
    %8 = vector.broadcast %cst_6 : f32 to vector<64x64xf32>
    %9 = arith.mulf %8, %5 : vector<64x64xf32>
    %10 = arith.select %7, %5, %9 : vector<64x64xi1>, vector<64x64xf32>
    %c0_7 = arith.constant 0 : index
    %c0_8 = arith.constant 0 : index
    %11 = vector.load %arg4[%c0_7, %c0_8] : memref<64x64xf32, #tpu.memory_space<vmem>>, vector<64x64xf32>
    tpu.vector_store %arg4[%c0_7, %c0_8], %10 {strides = array<i32>} : memref<64x64xf32, #tpu.memory_space<vmem>>, vector<64x64xf32>,
    return
  }
  func.func @transform_0(%arg0: i32) -> (i32, i32) {
    %c0_i32 = arith.constant 0 : i32
    %c0_i32_0 = arith.constant 0 : i32
    return %arg0, %c0_i32 : i32, i32
  }
  func.func @transform_1(%arg0: i32) -> (i32, i32) {
    %c0_i32 = arith.constant 0 : i32
    %c0_i32_0 = arith.constant 0 : i32
    %c0_i32_1 = arith.constant 0 : i32
    return %c0_i32, %c0_i32_0 : i32, i32
  }
  func.func @transform_2(%arg0: i32) -> (i32, i32) {
    %c0_i32 = arith.constant 0 : i32
    %c0_i32_0 = arith.constant 0 : i32
    %c0_i32_1 = arith.constant 0 : i32
    return %c0_i32, %c0_i32_0 : i32, i32
  }
  func.func @transform_3(%arg0: i32) -> (i32, i32) {
    %c0_i32 = arith.constant 0 : i32
    %c0_i32_0 = arith.constant 0 : i32
    return %arg0, %c0_i32 : i32, i32
  }
}

</mosaic_0001>

<llo_original>
// kernel: tpu_custom_call.1
$region0: #{tpu_custom_call.1}
  #allocation0 [shape = 'u32[]', space=smem, size = 0x4, offset = 0x4, fixed_abs, tag = 'smem constant byte address 0x4 - core index']
  #allocation1 [shape = 'u32[72,128]{1,0:T(1,128)}', space=vmem, size = 0x9000, scoped, tag = 'internal scratch']
  %s0 = inlined_call_operand.vmem [shape: f32[64,4], index: 0, kind: input, shape index: {}]
  %s1 = inlined_call_operand.vmem [shape: f32[64,4], index: 1, kind: input, shape index: {}]
  %s2 = inlined_call_operand.vmem [shape: f32[1,64], index: 2, kind: input, shape index: {}]
  %s3 = inlined_call_operand.hbm [shape: f32[64,64], index: 3, kind: output, shape index: {}]
  %s4 = sld [smem:[#allocation0]]
  $region22: #{tpu_custom_call.1} parent=0
    _
  %s6 = ssub.s32 1, %s4
  %s7 = scalar_select 0, %s6, %s4
  $region1: #{tpu_custom_call.1} parent=0
    #allocation2 [shape = 'u8[32768]{0}', space=vmem, size = 0x8000, scoped, tag = 'output window, operand 0, single buffered']
    #allocation3 [shape = 's32[1]{0}', space=sflag, size = 0x4, scoped, tag = 'scoped memory for tpu_custom_call.1']
    %8 = vsyncpa [#allocation3], 0
    // Predicated region
    $region2: #{tpu_custom_call.1} parent=1 // pred_check
      _
    $region3: #{tpu_custom_call.1} parent=1 // pred_check_branch
      %10 = sbr.rel (0) target = $region5
    $region4: #{tpu_custom_call.1} parent=1 // pred_region
      _
    $region5: #{tpu_custom_call.1} parent=1 // pred_fallthru
      _
    // Predicated region
    $region6: #{tpu_custom_call.1} parent=1 // pred_check
      _
    $region7: #{tpu_custom_call.1} parent=1 // pred_check_branch
      %12 = sbr.rel (0) target = $region9
    $region8: #{tpu_custom_call.1} parent=1 // pred_region
      _
    $region9: #{tpu_custom_call.1} parent=1 // pred_fallthru
      _
    // Predicated region
    $region10: #{tpu_custom_call.1} parent=1 // pred_check
      _
    $region11: #{tpu_custom_call.1} parent=1 // pred_check_branch
      %14 = sbr.rel (0) target = $region13
    $region12: #{tpu_custom_call.1} parent=1 // pred_region
      _
    $region13: #{tpu_custom_call.1} parent=1 // pred_fallthru
      _
    %v15 = vld [vmem:[%s0] sm:$0xff]
    %v16 = vld [vmem:[%s0 + $0x8] sm:$0xff]
    %v17 = vld [vmem:[%s0 + $0x10] sm:$0xff]
    %v18 = vld [vmem:[%s0 + $0x18] sm:$0xff]
    %v19 = vld [vmem:[%s0 + $0x20] sm:$0xff]
    %v20 = vld [vmem:[%s0 + $0x28] sm:$0xff]
    %v21 = vld [vmem:[%s0 + $0x30] sm:$0xff]
    %v22 = vld [vmem:[%s0 + $0x38] sm:$0xff]
    %v23 = vld [vmem:[%s1] sm:$0xff]
    %v24 = vld [vmem:[%s1 + $0x8] sm:$0xff]
    %v25 = vld [vmem:[%s1 + $0x10] sm:$0xff]
    %v26 = vld [vmem:[%s1 + $0x18] sm:$0xff]
    %v27 = vld [vmem:[%s1 + $0x20] sm:$0xff]
    %v28 = vld [vmem:[%s1 + $0x28] sm:$0xff]
    %v29 = vld [vmem:[%s1 + $0x30] sm:$0xff]
    %v30 = vld [vmem:[%s1 + $0x38] sm:$0xff]
    %v31 = vld [vmem:[%s2] sm:$0x1]
    %v33 = vperm.slane %v31, 0
    %vm35 = vcmask 31744
    %v37 = vsel %vm35, %v15, 0
    %v40 = vsel %vm35, %v16, 0
    %v43 = vsel %vm35, %v17, 0
    %v46 = vsel %vm35, %v18, 0
    %v49 = vsel %vm35, %v19, 0
    %v52 = vsel %vm35, %v20, 0
    %v55 = vsel %vm35, %v21, 0
    %v58 = vsel %vm35, %v22, 0
    %v61 = vsel %vm35, %v23, 0
    %v64 = vsel %vm35, %v24, 0
    %v67 = vsel %vm35, %v25, 0
    %v70 = vsel %vm35, %v26, 0
    %v73 = vsel %vm35, %v27, 0
    %v76 = vsel %vm35, %v28, 0
    %v79 = vsel %vm35, %v29, 0
    %v82 = vsel %vm35, %v30, 0
    %84 = vmatpush.xpose.msra.mxu0 0.0
    %85 = vmatpush.xpose.msra.mxu0 0.0
    %86 = vmatpush.xpose.msra.mxu0 0.0
    %87 = vmatpush.xpose.msra.mxu0 0.0
    %88 = vmatpush.xpose.msra.mxu0 0.0
    %89 = vmatpush.xpose.msra.mxu0 0.0
    %90 = vmatpush.xpose.msra.mxu0 0.0
    %91 = vmatpush.xpose.msra.mxu0 0.0
    %92 = vmatpush.xpose.msra.mxu0 %v82
    %93 = vmatpush.xpose.msra.mxu0 %v79
    %94 = vmatpush.xpose.msra.mxu0 %v76
    %95 = vmatpush.xpose.msra.mxu0 %v73
    %96 = vmatpush.xpose.msra.mxu0 %v70
    %97 = vmatpush.xpose.msra.mxu0 %v67
    %98 = vmatpush.xpose.msra.mxu0 %v64
    %99 = vmatpush.xpose.msra.mxu0 %v61
    %100 = vmatmul.f32.gmra.mxu0 %v37
    %v101 = vpop.f32.mrf.mxu0
    %v102 = vadd.f32 %v33, %v101
    %103 = vmatmul.f32.gmra.mxu0 %v40
    %v104 = vpop.f32.mrf.mxu0
    %v105 = vadd.f32 %v33, %v104
    %106 = vmatmul.f32.gmra.mxu0 %v43
    %v107 = vpop.f32.mrf.mxu0
    %v108 = vadd.f32 %v33, %v107
    %109 = vmatmul.f32.gmra.mxu0 %v46
    %v110 = vpop.f32.mrf.mxu0
    %v111 = vadd.f32 %v33, %v110
    %112 = vmatmul.f32.gmra.mxu0 %v49
    %v113 = vpop.f32.mrf.mxu0
    %v114 = vadd.f32 %v33, %v113
    %115 = vmatmul.f32.gmra.mxu0 %v52
    %v116 = vpop.f32.mrf.mxu0
    %v117 = vadd.f32 %v33, %v116
    %118 = vmatmul.f32.gmra.mxu0 %v55
    %v119 = vpop.f32.mrf.mxu0
    %v120 = vadd.f32 %v33, %v119
    %121 = vmatmul.f32.gmra.mxu0 %v58
    %v122 = vpop.f32.mrf.mxu0
    %v123 = vadd.f32 %v33, %v122
    %124 = vdwg.mxu0
    %vm125 = vcmp.ge.f32.partialorder %v102, 0.0
    %vm126 = vcmp.ge.f32.partialorder %v105, 0.0
    %vm127 = vcmp.ge.f32.partialorder %v108, 0.0
    %vm128 = vcmp.ge.f32.partialorder %v111, 0.0
    %vm129 = vcmp.ge.f32.partialorder %v114, 0.0
    %vm130 = vcmp.ge.f32.partialorder %v117, 0.0
    %vm131 = vcmp.ge.f32.partialorder %v120, 0.0
    %vm132 = vcmp.ge.f32.partialorder %v123, 0.0
    %v133 = vmul.f32 %v102, 0.2
    %v134 = vmul.f32 %v105, 0.2
    %v135 = vmul.f32 %v108, 0.2
    %v136 = vmul.f32 %v111, 0.2
    %v137 = vmul.f32 %v114, 0.2
    %v138 = vmul.f32 %v117, 0.2
    %v139 = vmul.f32 %v120, 0.2
    %v140 = vmul.f32 %v123, 0.2
    %v141 = vsel %vm125, %v102, %v133
    %v142 = vsel %vm126, %v105, %v134
    %v143 = vsel %vm127, %v108, %v135
    %v144 = vsel %vm128, %v111, %v136
    %v145 = vsel %vm129, %v114, %v137
    %v146 = vsel %vm130, %v117, %v138
    %v147 = vsel %vm131, %v120, %v139
    %v148 = vsel %vm132, %v123, %v140
    %vm149 = vcmask 523264
    %150 = vst.msk [vmem:[#allocation2] sm:$0xff] %vm149, %v141
    %151 = vst.msk [vmem:[#allocation2 + $0x8] sm:$0xff] %vm149, %v142
    %152 = vst.msk [vmem:[#allocation2 + $0x10] sm:$0xff] %vm149, %v143
    %153 = vst.msk [vmem:[#allocation2 + $0x18] sm:$0xff] %vm149, %v144
    %154 = vst.msk [vmem:[#allocation2 + $0x20] sm:$0xff] %vm149, %v145
    %155 = vst.msk [vmem:[#allocation2 + $0x28] sm:$0xff] %vm149, %v146
    %156 = vst.msk [vmem:[#allocation2 + $0x30] sm:$0xff] %vm149, %v147
    %157 = vst.msk [vmem:[#allocation2 + $0x38] sm:$0xff] %vm149, %v148
    // Predicated region
    $region14: #{tpu_custom_call.1} parent=1 // pred_check
      _
    $region15: #{tpu_custom_call.1} parent=1 // pred_check_branch
      %159 = sbr.rel (0) target = $region17
    $region16: #{tpu_custom_call.1} parent=1 // pred_region
      %161 = vsyncadd [#allocation3], 0
      %s162 = sshll.u32 [#allocation2], 4
      %s163 = int_to_ptr.vmem [resolvable:$true] %s162
      %s164 = sshll.u32 %s3, 4
      %s165 = int_to_ptr.hbm [resolvable:$true] %s164
      %170 = dma.vmem_to_hbm [thread:$0]  %s163, 1024, %s165, [#allocation3], 128, 128, 8
    $region17: #{tpu_custom_call.1} parent=1 // pred_fallthru
      _
    // Predicated region
    $region18: #{tpu_custom_call.1} parent=1 // pred_check
      _
    $region19: #{tpu_custom_call.1} parent=1 // pred_check_branch
      %172 = sbr.rel (0) target = $region21
    $region20: #{tpu_custom_call.1} parent=1 // pred_region
      %174 = dma.done [#allocation3], 1024
    $region21: #{tpu_custom_call.1} parent=1 // pred_fallthru
      _
    %175 = vsyncpa [#allocation3], 1

</llo_original>
